<compile_context>
chip_gen: v7x
topology: tpu7x:2x2x1
jax: 0.10.0
libtpu: 0.0.40
codegen_flags: <defaults>
</compile_context>

<pallas_src>
import functools

import jax
import jax.numpy as jnp
from jax import lax
from jax.experimental import pallas as pl
from jax.experimental.pallas import tpu as pltpu

BN_EPS = 1e-5


def _vmem_limit_bytes():
    """Per-kernel VMEM budget derived from the attached chip (safe fallback)."""
    try:
        cap = int(pltpu.get_tpu_info().vmem_capacity_bytes)
    except Exception:
        cap = 64 * 1024 * 1024  # assume smallest (v7x: 64 MiB per TensorCore)
    return min((cap * 3) // 4, 96 * 1024 * 1024)


def _group_inputs(channels, sublane_pack):
    """Group runs of consecutive small inputs so each group fills >= 1 sublane tile."""
    groups, cur, cur_c = [], [], 0
    for i, c in enumerate(channels):
        if c < sublane_pack:
            cur.append(i)
            cur_c += c
            if cur_c >= sublane_pack:
                groups.append(cur)
                cur, cur_c = [], 0
        else:
            if cur:
                groups.append(cur)
                cur, cur_c = [], 0
            groups.append([i])
    if cur:
        groups.append(cur)
    return groups


def _make_conv_stats_kernel(num_groups, hw, mt, masked_tail):
    """Phase 1: y = sum_g w_g @ x_g, write y, accumulate per-channel sum/sumsq."""

    def kernel(*refs):
        x_refs = refs[:num_groups]                      # each (C_g, mt), compute dtype
        w_refs = refs[num_groups:2 * num_groups]        # each (Cout, C_g)
        y_ref = refs[2 * num_groups]                    # (Cout, mt)
        stats_ref = refs[2 * num_groups + 1]            # (Cout, 2) f32, resident per n
        acc_ref = refs[2 * num_groups + 2] if num_groups > 1 else None

        @pl.when(pl.program_id(1) == 0)
        def _init():
            stats_ref[...] = jnp.zeros_like(stats_ref)

        if num_groups == 1:
            y = jnp.dot(w_refs[0][...], x_refs[0][...],
                        preferred_element_type=jnp.float32)
        else:
            acc_ref[...] = jnp.dot(w_refs[0][...], x_refs[0][...],
                                   preferred_element_type=jnp.float32)
            for xg, wg in zip(x_refs[1:], w_refs[1:]):
                acc_ref[...] += jnp.dot(wg[...], xg[...],
                                        preferred_element_type=jnp.float32)
            y = acc_ref[...]

        # Write pre-BN y (phase 2 re-reads it instead of recomputing the matmul).
        y_ref[...] = y.astype(y_ref.dtype)

        if masked_tail:
            # Last M tile may extend past H*W: zero out-of-range lanes before
            # they enter the statistics.
            limit = hw - pl.program_id(1) * mt
            col = lax.broadcasted_iota(jnp.int32, y.shape, 1)
            y = jnp.where(col < limit, y, 0.0)

        ssum = jnp.sum(y, axis=1, keepdims=True)
        ssq = jnp.sum(y * y, axis=1, keepdims=True)
        stats_ref[...] += jnp.concatenate([ssum, ssq], axis=1)

    return kernel


def _bn_relu_kernel(y_ref, scale_ref, shift_ref, o_ref):
    """Phase 2 (elementwise, in place): out = max(y * scale + shift, 0)."""
    y = y_ref[...].astype(jnp.float32)
    out = y * scale_ref[...] + shift_ref[...]
    o_ref[...] = jnp.maximum(out, 0.0).astype(o_ref.dtype)


def root_forward(xs, weight, gamma, beta, *, compute_dtype=None,
                 out_dtype=jnp.float32, max_m_tile=None):
    """Forward of Root (kernel_size=1, training-mode BatchNorm).

    xs:     list of NCHW arrays (same N, H, W).
    weight: (Cout, Cin, 1, 1) 1x1-conv weight, Cin = sum of input channels.
    gamma, beta: (Cout,) BatchNorm affine parameters.
    """
    N, _, H, W = xs[0].shape
    HW = H * W
    Cout, Cin = int(weight.shape[0]), int(weight.shape[1])
    c_each = [int(x.shape[1]) for x in xs]
    assert sum(c_each) == Cin
    assert weight.shape[2] == 1 and weight.shape[3] == 1

    in_dtype = xs[0].dtype
    if compute_dtype is None:
        # bf16 is the native MXU dtype; accumulation/stats/epilogue stay f32.
        compute_dtype = jnp.bfloat16 if in_dtype == jnp.float32 else in_dtype
    cdt = jnp.dtype(compute_dtype)
    odt = jnp.dtype(out_dtype)
    sublane_pack = 8 * (4 // cdt.itemsize)        # 8 for f32, 16 for bf16

    # ---- Build input groups (pre-pack tiny-channel children) -----------------
    groups = _group_inputs(c_each, sublane_pack)
    off = [0]
    for c in c_each:
        off.append(off[-1] + c)
    w2 = weight.reshape(Cout, Cin).astype(jnp.float32)

    x_groups, w_groups, g_channels = [], [], []
    for g in groups:
        mats = [xs[i].reshape(N, c_each[i], HW) for i in g]   # free reshapes
        xg = mats[0] if len(mats) == 1 else jnp.concatenate(mats, axis=1)
        x_groups.append(xg.astype(compute_dtype))
        lo, hi = off[g[0]], off[g[-1] + 1]
        w_groups.append(w2[:, lo:hi].astype(compute_dtype))
        g_channels.append(hi - lo)
    num_groups = len(groups)

    # ---- Tile selection (VMEM-budget driven, generation aware) ---------------
    vmem_limit = _vmem_limit_bytes()
    y_isz = odt.itemsize
    per_lane = max(
        2 * Cin * cdt.itemsize + 2 * Cout * y_isz
        + (4 * Cout if num_groups > 1 else 0),                 # phase 1
        2 * Cout * y_isz + 2 * Cout * odt.itemsize,            # phase 2
    )
    fixed = 2 * Cout * Cin * cdt.itemsize + 16 * Cout + (1 << 20)
    budget = max(int(vmem_limit * 0.5) - fixed, 128 * per_lane)
    mt_cap = min(max((budget // per_lane) // 128 * 128, 128), 8192)
    if max_m_tile is not None:
        mt_cap = max(128, min(mt_cap, (int(max_m_tile) // 128) * 128))

    if HW <= mt_cap:
        mt = HW                       # single full-extent tile (compiler masks pad lanes)
    elif HW % 128 == 0:
        best_div = 128
        d = 256
        while d <= mt_cap:
            if HW % d == 0:
                best_div = d
            d += 128
        mt = best_div if 2 * best_div >= mt_cap else mt_cap
    else:
        mt = mt_cap                   # multiple of 128; tail tile lane-masked
    n_mt = pl.cdiv(HW, mt)
    masked_tail = (HW % mt) != 0
    grid = (N, n_mt)

    x_specs = [pl.BlockSpec((None, c, mt), lambda n, m: (n, 0, m)) for c in g_channels]
    w_specs = [pl.BlockSpec((Cout, c), lambda n, m: (0, 0)) for c in g_channels]

    conv_flops = 2 * N * HW * Cin * Cout
    x_bytes = N * HW * Cin * cdt.itemsize
    w_bytes = Cout * Cin * cdt.itemsize
    y_bytes = N * HW * Cout * y_isz

    # ---- Phase 1: conv -> y (HBM) + per-sample per-channel sum / sumsq -------
    scratch = [pltpu.VMEM((Cout, mt), jnp.float32)] if num_groups > 1 else []
    y, stats = pl.pallas_call(
        _make_conv_stats_kernel(num_groups, HW, mt, masked_tail),
        out_shape=(jax.ShapeDtypeStruct((N, Cout, HW), odt),
                   jax.ShapeDtypeStruct((N, Cout, 2), jnp.float32)),
        grid_spec=pltpu.PrefetchScalarGridSpec(
            num_scalar_prefetch=0,
            grid=grid,
            in_specs=x_specs + w_specs,
            out_specs=(pl.BlockSpec((None, Cout, mt), lambda n, m: (n, 0, m)),
                       pl.BlockSpec((None, Cout, 2), lambda n, m: (n, 0, 0))),
            scratch_shapes=scratch,
        ),
        compiler_params=pltpu.CompilerParams(
            dimension_semantics=("parallel", "arbitrary"),
            vmem_limit_bytes=vmem_limit,
        ),
        cost_estimate=pl.CostEstimate(
            flops=conv_flops + 3 * N * HW * Cout, transcendentals=0,
            bytes_accessed=x_bytes + w_bytes + y_bytes + N * Cout * 8),
    )(*x_groups, *w_groups)

    # ---- Fold BN into per-channel scale/shift (tiny f32 math in JAX) ---------
    # NOTE: single-pass E[y^2]-E[y]^2 variance in f32; clamped at 0.
    tot = jnp.sum(stats, axis=0)                       # (Cout, 2)
    cnt = jnp.float32(N * HW)
    mean = tot[:, 0] / cnt
    var = jnp.maximum(tot[:, 1] / cnt - mean * mean, 0.0)
    inv_std = lax.rsqrt(var + BN_EPS)
    g = gamma.astype(jnp.float32)
    b = beta.astype(jnp.float32)
    scale = (g * inv_std).reshape(Cout, 1)
    shift = (b - mean * g * inv_std).reshape(Cout, 1)

    # ---- Phase 2: elementwise BN-apply + ReLU, in place over y ---------------
    out = pl.pallas_call(
        _bn_relu_kernel,
        out_shape=jax.ShapeDtypeStruct((N, Cout, HW), odt),
        grid_spec=pltpu.PrefetchScalarGridSpec(
            num_scalar_prefetch=0,
            grid=grid,
            in_specs=[pl.BlockSpec((None, Cout, mt), lambda n, m: (n, 0, m)),
                      pl.BlockSpec((Cout, 1), lambda n, m: (0, 0)),
                      pl.BlockSpec((Cout, 1), lambda n, m: (0, 0))],
            out_specs=pl.BlockSpec((None, Cout, mt), lambda n, m: (n, 0, m)),
        ),
        compiler_params=pltpu.CompilerParams(
            dimension_semantics=("parallel", "parallel"),
            vmem_limit_bytes=vmem_limit,
        ),
        input_output_aliases={0: 0},
        cost_estimate=pl.CostEstimate(
            flops=3 * N * HW * Cout, transcendentals=0,
            bytes_accessed=y_bytes + N * HW * Cout * odt.itemsize + 8 * Cout),
    )(y, scale, shift)

    # (N, Cout, H*W) is already NCHW: free reshape, no transpose.
    return out.reshape(N, Cout, H, W)


def root_reference(xs, weight, gamma, beta):
    """Pure-JAX reference mirroring PyTorch semantics (training-mode BN)."""
    x = jnp.concatenate(xs, axis=1).astype(jnp.float32)       # NCHW
    w = weight.reshape(weight.shape[0], weight.shape[1]).astype(jnp.float32)
    y = jnp.einsum('nchw,oc->nohw', x, w)                     # 1x1 conv, no bias
    mean = jnp.mean(y, axis=(0, 2, 3), keepdims=True)
    var = jnp.mean((y - mean) ** 2, axis=(0, 2, 3), keepdims=True)
    y_hat = (y - mean) * lax.rsqrt(var + BN_EPS)
    out = y_hat * gamma.reshape(1, -1, 1, 1) + beta.reshape(1, -1, 1, 1)
    return jnp.maximum(out, 0.0)


if __name__ == "__main__":
    key = jax.random.PRNGKey(0)
    k1, k2, k3, kw, kg, kb = jax.random.split(key, 6)

    # ---- Case 1: two feature maps (N=2, C=4, 16x16) -> Cout=16 ---------------
    N, C_each, H, W = 2, 4, 16, 16
    Cin, Cout = 2 * C_each, 16
    x1 = jax.random.normal(k1, (N, C_each, H, W), dtype=jnp.float32)
    x2 = jax.random.normal(k2, (N, C_each, H, W), dtype=jnp.float32)
    weight = 0.1 * jax.random.normal(kw, (Cout, Cin, 1, 1), dtype=jnp.float32)
    gamma = 1.0 + 0.1 * jax.random.normal(kg, (Cout,), dtype=jnp.float32)
    beta = 0.05 * jax.random.normal(kb, (Cout,), dtype=jnp.float32)

    ref = root_reference([x1, x2], weight, gamma, beta)

    # Exact f32 compute path (matches PyTorch math closely).
    fwd_f32 = jax.jit(functools.partial(root_forward, compute_dtype=jnp.float32))
    out = jax.block_until_ready(fwd_f32([x1, x2], weight, gamma, beta))
    assert out.shape == (N, Cout, H, W)
    assert jnp.allclose(out, ref, atol=1e-3, rtol=1e-3), "f32 path mismatch"

    # Default path: bf16 MXU compute, f32 accumulation / BN statistics.
    fwd = jax.jit(root_forward)
    out_bf16 = jax.block_until_ready(fwd([x1, x2], weight, gamma, beta))
    assert out_bf16.shape == (N, Cout, H, W)
    assert float(jnp.max(jnp.abs(out_bf16 - ref))) < 1e-1, "bf16 path mismatch"

    # ---- Case 2: 14x14 spatial (H*W=196, not a multiple of 128), uneven
    # channel groups, forced 128-lane tiles -> exercises grouping, the VMEM
    # scratch accumulator and the lane-masked tail tile. -----------------------
    H2 = W2 = 14
    cs = (4, 4, 8)
    Cin2, Cout2 = sum(cs), 32
    keys = jax.random.split(k3, 6)
    xs2 = [jax.random.normal(keys[i], (N, cs[i], H2, W2), dtype=jnp.float32)
           for i in range(3)]
    w2 = 0.1 * jax.random.normal(keys[3], (Cout2, Cin2, 1, 1), dtype=jnp.float32)
    g2 = 1.0 + 0.1 * jax.random.normal(keys[4], (Cout2,), dtype=jnp.float32)
    b2 = 0.05 * jax.random.normal(keys[5], (Cout2,), dtype=jnp.float32)

    ref2 = root_reference(xs2, w2, g2, b2)
    fwd_tail = jax.jit(functools.partial(root_forward, compute_dtype=jnp.float32,
                                         max_m_tile=128))
    out2 = jax.block_until_ready(fwd_tail(xs2, w2, g2, b2))
    assert out2.shape == (N, Cout2, H2, W2)
    assert jnp.allclose(out2, ref2, atol=1e-3, rtol=1e-3), "masked-tail mismatch"

    print("KERNEL_OK")
</pallas_src>

<mosaic_0001>
module attributes {stable_mosaic.version = 11 : i64} {
  func.func @kernel(%arg0: i32, %arg1: i32, %arg2: memref<1x8x256xf32, #tpu.memory_space<vmem>>, %arg3: memref<16x8xf32, #tpu.memory_space<vmem>>, %arg4: memref<1x16x256xf32, #tpu.memory_space<vmem>>, %arg5: memref<1x16x2xf32, #tpu.memory_space<vmem>>) attributes {dimension_semantics = [#tpu.dimension_semantics<parallel>, #tpu.dimension_semantics<arbitrary>], iteration_bounds = array<i64: 2, 1>, scalar_prefetch = 0 : i64, scratch_operands = 0 : i64, tpu.core_type = #tpu.core_type<tc>, window_params = [{transform_indices = @transform_0, window_bounds = array<i64: 1, 8, 256>}, {pipeline_mode = #tpu.pipeline_mode<synchronous>, transform_indices = @transform_1, window_bounds = array<i64: 16, 8>}, {transform_indices = @transform_2, window_bounds = array<i64: 1, 16, 256>}, {transform_indices = @transform_3, window_bounds = array<i64: 1, 16, 2>}]} {
    %c0_i32 = arith.constant 0 : i32
    %0 = arith.cmpi eq, %arg1, %c0_i32 : i32
    %1 = arith.extui %0 : i1 to i32
    %c0_i32_0 = arith.constant 0 : i32
    %2 = arith.cmpi ne, %1, %c0_i32_0 : i32
    scf.if %2 {
      %cst_16 = arith.constant 0.000000e+00 : f32
      %22 = vector.broadcast %cst_16 : f32 to vector<16x2xf32>
      %c0_17 = arith.constant 0 : index
      %c0_18 = arith.constant 0 : index
      %c0_19 = arith.constant 0 : index
      %23 = vector.load %arg5[%c0_17, %c0_18, %c0_19] : memref<1x16x2xf32, #tpu.memory_space<vmem>>, vector<1x16x2xf32>
      %24 = vector.shape_cast %23 : vector<1x16x2xf32> to vector<16x2xf32>
      %25 = vector.shape_cast %22 : vector<16x2xf32> to vector<1x16x2xf32>
      tpu.vector_store %arg5[%c0_17, %c0_18, %c0_19], %25 {strides = array<i32>} : memref<1x16x2xf32, #tpu.memory_space<vmem>>, vector<1x16x2xf32>,
    } else {
    }
    %c0 = arith.constant 0 : index
    %c0_1 = arith.constant 0 : index
    %3 = vector.load %arg3[%c0, %c0_1] : memref<16x8xf32, #tpu.memory_space<vmem>>, vector<16x8xf32>
    %c0_2 = arith.constant 0 : index
    %c0_3 = arith.constant 0 : index
    %c0_4 = arith.constant 0 : index
    %4 = vector.load %arg2[%c0_2, %c0_3, %c0_4] : memref<1x8x256xf32, #tpu.memory_space<vmem>>, vector<1x8x256xf32>
    %5 = vector.shape_cast %4 : vector<1x8x256xf32> to vector<8x256xf32>
    %cst = arith.constant dense<0.000000e+00> : vector<16x256xf32>
    %6 = tpu.matmul %3, %5, %cst {dimension_numbers = #tpu.dot_dimension_numbers<[1], [0], [0], [1], [0, 0, 1, 1], [], []>} : vector<16x8xf32>, vector<8x256xf32>, vector<16x256xf32> -> vector<16x256xf32>
    %c0_5 = arith.constant 0 : index
    %c0_6 = arith.constant 0 : index
    %c0_7 = arith.constant 0 : index
    %7 = vector.load %arg4[%c0_5, %c0_6, %c0_7] : memref<1x16x256xf32, #tpu.memory_space<vmem>>, vector<1x16x256xf32>
    %8 = vector.shape_cast %7 : vector<1x16x256xf32> to vector<16x256xf32>
    %9 = vector.shape_cast %6 : vector<16x256xf32> to vector<1x16x256xf32>
    tpu.vector_store %arg4[%c0_5, %c0_6, %c0_7], %9 {strides = array<i32>} : memref<1x16x256xf32, #tpu.memory_space<vmem>>, vector<1x16x256xf32>,
    %cst_8 = arith.constant dense<0.000000e+00> : vector<16xf32>
    %10 = vector.multi_reduction <add>, %6, %cst_8 [1] : vector<16x256xf32> to vector<16xf32>
    %11 = vector.shape_cast %10 : vector<16xf32> to vector<16x1xf32>
    %12 = arith.mulf %6, %6 : vector<16x256xf32>
    %cst_9 = arith.constant dense<0.000000e+00> : vector<16xf32>
    %13 = vector.multi_reduction <add>, %12, %cst_9 [1] : vector<16x256xf32> to vector<16xf32>
    %14 = vector.shape_cast %13 : vector<16xf32> to vector<16x1xf32>
    %c0_10 = arith.constant 0 : index
    %c0_11 = arith.constant 0 : index
    %c0_12 = arith.constant 0 : index
    %15 = vector.load %arg5[%c0_10, %c0_11, %c0_12] : memref<1x16x2xf32, #tpu.memory_space<vmem>>, vector<1x16x2xf32>
    %16 = vector.shape_cast %15 : vector<1x16x2xf32> to vector<16x2xf32>
    %17 = tpu.concatenate %11, %14 in 1 : vector<16x1xf32>, vector<16x1xf32> -> vector<16x2xf32>
    %18 = arith.addf %16, %17 : vector<16x2xf32>
    %c0_13 = arith.constant 0 : index
    %c0_14 = arith.constant 0 : index
    %c0_15 = arith.constant 0 : index
    %19 = vector.load %arg5[%c0_13, %c0_14, %c0_15] : memref<1x16x2xf32, #tpu.memory_space<vmem>>, vector<1x16x2xf32>
    %20 = vector.shape_cast %19 : vector<1x16x2xf32> to vector<16x2xf32>
    %21 = vector.shape_cast %18 : vector<16x2xf32> to vector<1x16x2xf32>
    tpu.vector_store %arg5[%c0_13, %c0_14, %c0_15], %21 {strides = array<i32>} : memref<1x16x2xf32, #tpu.memory_space<vmem>>, vector<1x16x2xf32>,
    return
  }
  func.func @transform_0(%arg0: i32, %arg1: i32) -> (i32, i32, i32) {
    %c0_i32 = arith.constant 0 : i32
    %c0_i32_0 = arith.constant 0 : i32
    return %arg0, %c0_i32, %arg1 : i32, i32, i32
  }
  func.func @transform_1(%arg0: i32, %arg1: i32) -> (i32, i32) {
    %c0_i32 = arith.constant 0 : i32
    %c0_i32_0 = arith.constant 0 : i32
    %c0_i32_1 = arith.constant 0 : i32
    return %c0_i32, %c0_i32_0 : i32, i32
  }
  func.func @transform_2(%arg0: i32, %arg1: i32) -> (i32, i32, i32) {
    %c0_i32 = arith.constant 0 : i32
    %c0_i32_0 = arith.constant 0 : i32
    return %arg0, %c0_i32, %arg1 : i32, i32, i32
  }
  func.func @transform_3(%arg0: i32, %arg1: i32) -> (i32, i32, i32) {
    %c0_i32 = arith.constant 0 : i32
    %c0_i32_0 = arith.constant 0 : i32
    %c0_i32_1 = arith.constant 0 : i32
    return %arg0, %c0_i32, %c0_i32_0 : i32, i32, i32
  }
}

module attributes {stable_mosaic.version = 11 : i64} {
  func.func @_bn_relu_kernel(%arg0: i32, %arg1: i32, %arg2: memref<1x16x256xf32, #tpu.memory_space<vmem>>, %arg3: memref<16x1xf32, #tpu.memory_space<vmem>>, %arg4: memref<16x1xf32, #tpu.memory_space<vmem>>, %arg5: memref<1x16x256xf32, #tpu.memory_space<vmem>>) attributes {dimension_semantics = [#tpu.dimension_semantics<parallel>, #tpu.dimension_semantics<parallel>], iteration_bounds = array<i64: 2, 1>, scalar_prefetch = 0 : i64, scratch_operands = 0 : i64, tpu.core_type = #tpu.core_type<tc>, window_params = [{transform_indices = @transform_0, window_bounds = array<i64: 1, 16, 256>}, {pipeline_mode = #tpu.pipeline_mode<synchronous>, transform_indices = @transform_1, window_bounds = array<i64: 16, 1>}, {pipeline_mode = #tpu.pipeline_mode<synchronous>, transform_indices = @transform_2, window_bounds = array<i64: 16, 1>}, {transform_indices = @transform_3, window_bounds = array<i64: 1, 16, 256>}]} {
    %c0 = arith.constant 0 : index
    %c0_0 = arith.constant 0 : index
    %c0_1 = arith.constant 0 : index
    %0 = vector.load %arg2[%c0, %c0_0, %c0_1] : memref<1x16x256xf32, #tpu.memory_space<vmem>>, vector<1x16x256xf32>
    %1 = vector.shape_cast %0 : vector<1x16x256xf32> to vector<16x256xf32>
    %c0_2 = arith.constant 0 : index
    %c0_3 = arith.constant 0 : index
    %2 = vector.load %arg3[%c0_2, %c0_3] : memref<16x1xf32, #tpu.memory_space<vmem>>, vector<16x1xf32>
    %3 = vector.broadcast %2 : vector<16x1xf32> to vector<16x256xf32>
    %4 = arith.mulf %1, %3 : vector<16x256xf32>
    %c0_4 = arith.constant 0 : index
    %c0_5 = arith.constant 0 : index
    %5 = vector.load %arg4[%c0_4, %c0_5] : memref<16x1xf32, #tpu.memory_space<vmem>>, vector<16x1xf32>
    %6 = vector.broadcast %5 : vector<16x1xf32> to vector<16x256xf32>
    %7 = arith.addf %4, %6 : vector<16x256xf32>
    %cst = arith.constant 0.000000e+00 : f32
    %8 = vector.broadcast %cst : f32 to vector<16x256xf32>
    %9 = arith.maximumf %7, %8 : vector<16x256xf32>
    %c0_6 = arith.constant 0 : index
    %c0_7 = arith.constant 0 : index
    %c0_8 = arith.constant 0 : index
    %10 = vector.load %arg5[%c0_6, %c0_7, %c0_8] : memref<1x16x256xf32, #tpu.memory_space<vmem>>, vector<1x16x256xf32>
    %11 = vector.shape_cast %10 : vector<1x16x256xf32> to vector<16x256xf32>
    %12 = vector.shape_cast %9 : vector<16x256xf32> to vector<1x16x256xf32>
    tpu.vector_store %arg5[%c0_6, %c0_7, %c0_8], %12 {strides = array<i32>} : memref<1x16x256xf32, #tpu.memory_space<vmem>>, vector<1x16x256xf32>,
    return
  }
  func.func @transform_0(%arg0: i32, %arg1: i32) -> (i32, i32, i32) {
    %c0_i32 = arith.constant 0 : i32
    %c0_i32_0 = arith.constant 0 : i32
    return %arg0, %c0_i32, %arg1 : i32, i32, i32
  }
  func.func @transform_1(%arg0: i32, %arg1: i32) -> (i32, i32) {
    %c0_i32 = arith.constant 0 : i32
    %c0_i32_0 = arith.constant 0 : i32
    %c0_i32_1 = arith.constant 0 : i32
    return %c0_i32, %c0_i32_0 : i32, i32
  }
  func.func @transform_2(%arg0: i32, %arg1: i32) -> (i32, i32) {
    %c0_i32 = arith.constant 0 : i32
    %c0_i32_0 = arith.constant 0 : i32
    %c0_i32_1 = arith.constant 0 : i32
    return %c0_i32, %c0_i32_0 : i32, i32
  }
  func.func @transform_3(%arg0: i32, %arg1: i32) -> (i32, i32, i32) {
    %c0_i32 = arith.constant 0 : i32
    %c0_i32_0 = arith.constant 0 : i32
    return %arg0, %c0_i32, %arg1 : i32, i32, i32
  }
}

</mosaic_0001>

<llo_original>
// kernel: root_forward.3
$region0: #{root_forward.3}
  #allocation0 [shape = 'u32[]', space=smem, size = 0x4, offset = 0x4, fixed_abs, tag = 'smem constant byte address 0x4 - core index']
  #allocation1 [shape = 'u32[144,128]{1,0:T(1,128)}', space=vmem, size = 0x12000, scoped, tag = 'internal scratch']
  %s0 = inlined_call_operand.vmem [shape: f32[2,16,256], index: 0, kind: input, shape index: {}, may-alias: {0,3}]
  %s1 = inlined_call_operand.vmem [shape: f32[16,1], index: 1, kind: input, shape index: {}]
  %s2 = inlined_call_operand.vmem [shape: f32[16,1], index: 2, kind: input, shape index: {}]
  %s3 = inlined_call_operand.vmem [shape: f32[2,16,256], index: 3, kind: output, shape index: {}, may-alias: {0,3}]
  %s4 = sld [smem:[#allocation0]]
  $region45: #{root_forward.3} parent=0
    _
  %s6 = ssub.s32 1, %s4
  %s7 = scalar_select 0, %s6, %s4
  loop: start=0, step=1, limit=4
  $region2: #{root_forward.3} parent=0 // loop_pre_header
    _
  $region3: #{root_forward.3} parent=0 // loop_header
    %s9 = sphi 0, %s13
    %p10 = scmp.ge.s32.totalorder %s9, 4
    %s16 = sphi 0, %s28
    %s17 = sphi 0, %s24
    %s18 = sphi 0, %s16
    %s19 = sphi 0, %s17
    %s20 = sphi 0, %s18
    %s21 = sphi 0, %s19
    %s33 = sphi 0, %s35
    %s36 = sphi 0, %s33
    %s37 = sphi 0, %s36
    %s53 = sphi 0, %s37
    %s57 = sphi 0, %s57
    %s59 = sphi 0, %s57
    %s60 = sphi 0, %s59
    %s74 = sphi 0, %s60
    %s78 = sphi 0, %s78
    %s80 = sphi 0, %s78
    %s81 = sphi 0, %s80
    %s95 = sphi 0, %s81
    %s103 = sphi 0, %s105
    %s106 = sphi 0, %s103
    %s107 = sphi 0, %s106
    %s123 = sphi 0, %s107
  $region4: #{root_forward.3} parent=0 // loop_header_branch
    %12 = sbr.rel (%p10) target = $region8
  $region5: #{root_forward.3} parent=0 // loop_body
    %s14 = ssub.s32 %s9, 1
    %s15 = ssub.s32 %s9, 2
    %s22 = sadd.s32 1, %s17
    %p23 = scmp.ge.s32.totalorder %s22, 1
    %s24 = scalar_select %p23, 0, %s22
    %s25 = sadd.s32 1, %s16
    %s26 = scalar_select %p23, %s25, %s16
    %p27 = scmp.ge.s32.totalorder %s26, 2
    %s28 = scalar_select %p27, 0, %s26
    %s29 = ssub.s32 %s16, %s28
    %s30 = ssub.s32 %s17, %s24
    %s31 = sor.u32 %s29, %s30
    %p32 = scmp.eq.s32.totalorder %s31, 0
    %s34 = sadd.s32 %s33, 1
    %s35 = scalar_select %p32, %s33, %s34
    %p38 = pneg %p32
    %p39 = scmp.eq.s32.totalorder %s9, 1
    %p40 = por %p38, %p39
    %p41 = scmp.ne.s32.totalorder %s33, %s36
    %p42 = scmp.eq.s32.totalorder %s9, 0
    %p43 = por %p41, %p42
    %p44 = scmp.ne.s32.totalorder %s33, %s36
    %p45 = scmp.eq.s32.totalorder %s14, 1
    %p46 = por %p44, %p45
    %p47 = scmp.ne.s32.totalorder %s36, %s37
    %p48 = scmp.eq.s32.totalorder %s14, 0
    %p49 = por %p47, %p48
    %p50 = scmp.ne.s32.totalorder %s36, %s37
    %p51 = scmp.eq.s32.totalorder %s15, 1
    %p52 = por %p50, %p51
    %p54 = scmp.ne.s32.totalorder %s37, %s53
    %p55 = scmp.eq.s32.totalorder %s15, 0
    %p56 = por %p54, %p55
    %s58 = sadd.s32 %s57, 1
    %p61 = scmp.eq.s32.totalorder %s9, 1
    %p62 = scmp.ne.s32.totalorder %s57, %s59
    %p63 = scmp.eq.s32.totalorder %s9, 0
    %p64 = por %p62, %p63
    %p65 = scmp.ne.s32.totalorder %s57, %s59
    %p66 = scmp.eq.s32.totalorder %s14, 1
    %p67 = por %p65, %p66
    %p68 = scmp.ne.s32.totalorder %s59, %s60
    %p69 = scmp.eq.s32.totalorder %s14, 0
    %p70 = por %p68, %p69
    %p71 = scmp.ne.s32.totalorder %s59, %s60
    %p72 = scmp.eq.s32.totalorder %s15, 1
    %p73 = por %p71, %p72
    %p75 = scmp.ne.s32.totalorder %s60, %s74
    %p76 = scmp.eq.s32.totalorder %s15, 0
    %p77 = por %p75, %p76
    %s79 = sadd.s32 %s78, 1
    %p82 = scmp.eq.s32.totalorder %s9, 1
    %p83 = scmp.ne.s32.totalorder %s78, %s80
    %p84 = scmp.eq.s32.totalorder %s9, 0
    %p85 = por %p83, %p84
    %p86 = scmp.ne.s32.totalorder %s78, %s80
    %p87 = scmp.eq.s32.totalorder %s14, 1
    %p88 = por %p86, %p87
    %p89 = scmp.ne.s32.totalorder %s80, %s81
    %p90 = scmp.eq.s32.totalorder %s14, 0
    %p91 = por %p89, %p90
    %p92 = scmp.ne.s32.totalorder %s80, %s81
    %p93 = scmp.eq.s32.totalorder %s15, 1
    %p94 = por %p92, %p93
    %p96 = scmp.ne.s32.totalorder %s81, %s95
    %p97 = scmp.eq.s32.totalorder %s15, 0
    %p98 = por %p96, %p97
    %s99 = ssub.s32 %s16, %s28
    %s100 = ssub.s32 %s17, %s24
    %s101 = sor.u32 %s99, %s100
    %p102 = scmp.eq.s32.totalorder %s101, 0
    %s104 = sadd.s32 %s103, 1
    %s105 = scalar_select %p102, %s103, %s104
    %p108 = pneg %p102
    %p109 = scmp.eq.s32.totalorder %s9, 1
    %p110 = por %p108, %p109
    %p111 = scmp.ne.s32.totalorder %s103, %s106
    %p112 = scmp.eq.s32.totalorder %s9, 0
    %p113 = por %p111, %p112
    %p114 = scmp.ne.s32.totalorder %s103, %s106
    %p115 = scmp.eq.s32.totalorder %s14, 1
    %p116 = por %p114, %p115
    %p117 = scmp.ne.s32.totalorder %s106, %s107
    %p118 = scmp.eq.s32.totalorder %s14, 0
    %p119 = por %p117, %p118
    %p120 = scmp.ne.s32.totalorder %s106, %s107
    %p121 = scmp.eq.s32.totalorder %s15, 1
    %p122 = por %p120, %p121
    %p124 = scmp.ne.s32.totalorder %s107, %s123
    %p125 = scmp.eq.s32.totalorder %s15, 0
    %p126 = por %p124, %p125
    %p127 = scmp.le.s32.totalorder 1, %s9
    %p128 = scmp.lt.s32.totalorder %s9, 3
    %p129 = pnand %p127, %p128
    %p130 = pneg %p129
    // Predicated region
    $region9: #{root_forward.3} parent=5 // pred_check
      _
    $region10: #{root_forward.3} parent=5 // pred_check_branch
      %132 = sbr.rel (%p129) target = $region12
    $region11: #{root_forward.3} parent=5 // pred_region
      %s133 = ssub.s32 %s9, 1
      // Predicated region
      $region13: #{root_forward.3} parent=11 // pred_check
        %p134 = pneg %p70
      $region14: #{root_forward.3} parent=11 // pred_check_branch
        %136 = sbr.rel (%p134) target = $region16
      $region15: #{root_forward.3} parent=11 // pred_region
        _
      $region16: #{root_forward.3} parent=11 // pred_fallthru
        _
      // Predicated region
      $region17: #{root_forward.3} parent=11 // pred_check
        %p137 = pneg %p91
      $region18: #{root_forward.3} parent=11 // pred_check_branch
        %139 = sbr.rel (%p137) target = $region20
      $region19: #{root_forward.3} parent=11 // pred_region
        _
      $region20: #{root_forward.3} parent=11 // pred_fallthru
        _
    $region12: #{root_forward.3} parent=5 // pred_fallthru
      _
    %p140 = scmp.lt.s32.totalorder %s9, 2
    // Predicated region
    $region21: #{root_forward.3} parent=5 // pred_check
      %p141 = pneg %p140
    $region22: #{root_forward.3} parent=5 // pred_check_branch
      %143 = sbr.rel (%p141) target = $region24
    $region23: #{root_forward.3} parent=5 // pred_region
      // Predicated region
      $region25: #{root_forward.3} parent=23 // pred_check
        %p144 = pneg %p43
      $region26: #{root_forward.3} parent=23 // pred_check_branch
        %146 = sbr.rel (%p144) target = $region28
      $region27: #{root_forward.3} parent=23 // pred_region
        %s147 = smul.u32 2, %s17
        %p148 = scmp.lt.s32.totalorder %s16, 1
        %s149 = scalar_select %p148, %s16, 1
        %p150 = scmp.lt.s32.totalorder %s147, 1
        %s151 = scalar_select %p150, %s147, 1
        %s152 = smul.addr %s149, 4
        %s153 = sadd.s32 %s151, %s152
        %s154 = smul.addr %s153, 8
        %s155 = scalar_lea.vmem %s0, %s154
        %s156 = smul.u32 2, %s17
      $region28: #{root_forward.3} parent=23 // pred_fallthru
        _
    $region24: #{root_forward.3} parent=5 // pred_fallthru
      _
    %p157 = scmp.le.s32.totalorder 1, %s9
    %p158 = scmp.lt.s32.totalorder %s9, 3
    %p159 = pnand %p157, %p158
    %p160 = pneg %p159
    // Predicated region
    $region29: #{root_forward.3} parent=5 // pred_check
      _
    $region30: #{root_forward.3} parent=5 // pred_check_branch
      %162 = sbr.rel (%p159) target = $region32
    $region31: #{root_forward.3} parent=5 // pred_region
      %s163 = ssub.s32 %s9, 1
      %s164 = smul.u32 2, %s19
      %p165 = scmp.lt.s32.totalorder %s18, 1
      %s166 = scalar_select %p165, %s18, 1
      %p167 = scmp.lt.s32.totalorder %s164, 1
      %s168 = scalar_select %p167, %s164, 1
      %s169 = smul.addr %s166, 4
      %s170 = sadd.s32 %s168, %s169
      %s171 = smul.addr %s170, 8
      %s172 = scalar_lea.vmem %s0, %s171
      %p173 = pneg %p49
      %p174 = pneg %p46
      %p175 = pneg %p70
      %p176 = pneg %p67
      %p177 = pneg %p91
      %p178 = pneg %p88
      %p179 = pneg %p119
      %p180 = pneg %p116
      %s181 = smul.u32 2, %s19
      %p182 = scmp.lt.s32.totalorder %s18, 1
      %s183 = scalar_select %p182, %s18, 1
      %p184 = scmp.lt.s32.totalorder %s181, 1
      %s185 = scalar_select %p184, %s181, 1
      %s186 = smul.addr %s183, 4
      %s187 = sadd.s32 %s185, %s186
      %s188 = smul.addr %s187, 8
      %s189 = scalar_lea.vmem %s3, %s188
      %s190 = smul.u32 2, %s19
      %p191 = scmp.lt.s32.totalorder %s18, 1
      %s192 = scalar_select %p191, %s18, 1
      %p193 = scmp.lt.s32.totalorder %s190, 1
      %s194 = scalar_select %p193, %s190, 1
      %s195 = smul.addr %s192, 4
      %s196 = sadd.s32 %s194, %s195
      %s197 = smul.addr %s196, 8
      %s198 = scalar_lea.vmem %s0, %s197
      %s199 = smul.u32 2, %s19
      %s200 = smul.u32 2, %s19
      %p201 = scmp.lt.s32.totalorder %s18, 1
      %s202 = scalar_select %p201, %s18, 1
      %p203 = scmp.lt.s32.totalorder %s200, 1
      %s204 = scalar_select %p203, %s200, 1
      %s205 = smul.addr %s202, 4
      %s206 = sadd.s32 %s204, %s205
      %s207 = smul.addr %s206, 8
      %s208 = scalar_lea.vmem %s3, %s207
      %s209 = smul.u32 2, %s19
      %v210 = vld [vmem:[%s198] sm:$0xff]
      %v211 = vld [vmem:[%s198 + $0x8] sm:$0xff]
      %v212 = vld [vmem:[%s198 + $0x10] sm:$0xff]
      %v213 = vld [vmem:[%s198 + $0x18] sm:$0xff]
      %v214 = vld [vmem:[%s1] sm:$0xff]
      %v215 = vld [vmem:[%s1 + $0x8] sm:$0xff]
      %217 = vset.pattern.permute.xlu0 0
      %218 = vperm.xlu0 %217, %v214
      %v219 = vpop.permute.xlu0 %218
      %222 = vset.pattern.permute.xlu0 0
      %223 = vperm.xlu0 %222, %v215
      %v224 = vpop.permute.xlu0 %223
      %v226 = vmul.f32 %v210, %v219
      %v227 = vmul.f32 %v211, %v219
      %v228 = vmul.f32 %v212, %v224
      %v229 = vmul.f32 %v213, %v224
      %v230 = vld [vmem:[%s2] sm:$0xff]
      %v231 = vld [vmem:[%s2 + $0x8] sm:$0xff]
      %233 = vset.pattern.permute.xlu0 0
      %234 = vperm.xlu0 %233, %v230
      %v235 = vpop.permute.xlu0 %234
      %238 = vset.pattern.permute.xlu0 0
      %239 = vperm.xlu0 %238, %v231
      %v240 = vpop.permute.xlu0 %239
      %v242 = vadd.f32 %v226, %v235
      %v243 = vadd.f32 %v227, %v235
      %v244 = vadd.f32 %v228, %v240
      %v245 = vadd.f32 %v229, %v240
      %v246 = vmax.f32 %v242, 0.0
      %v247 = vmax.f32 %v243, 0.0
      %v248 = vmax.f32 %v244, 0.0
      %v249 = vmax.f32 %v245, 0.0
      %250 = vst [vmem:[%s208] sm:$0xff] %v246
      %251 = vst [vmem:[%s208 + $0x8] sm:$0xff] %v247
      %252 = vst [vmem:[%s208 + $0x10] sm:$0xff] %v248
      %253 = vst [vmem:[%s208 + $0x18] sm:$0xff] %v249
      %s254 = smul.u32 2, %s19
      %p255 = scmp.lt.s32.totalorder %s18, 1
      %s256 = scalar_select %p255, %s18, 1
      %p257 = scmp.lt.s32.totalorder %s254, 1
      %s258 = scalar_select %p257, %s254, 1
      %s259 = smul.addr %s256, 4
      %s260 = sadd.s32 %s258, %s259
      %s261 = smul.addr %s260, 8
      %s262 = scalar_lea.vmem %s3, %s261
      // Predicated region
      $region33: #{root_forward.3} parent=31 // pred_check
        %p263 = pneg %p116
      $region34: #{root_forward.3} parent=31 // pred_check_branch
        %265 = sbr.rel (%p263) target = $region36
      $region35: #{root_forward.3} parent=31 // pred_region
        %s266 = smul.u32 2, %s19
      $region36: #{root_forward.3} parent=31 // pred_fallthru
        _
    $region32: #{root_forward.3} parent=5 // pred_fallthru
      _
    %p267 = scmp.le.s32.totalorder 2, %s9
    // Predicated region
    $region37: #{root_forward.3} parent=5 // pred_check
      %p268 = pneg %p267
    $region38: #{root_forward.3} parent=5 // pred_check_branch
      %270 = sbr.rel (%p268) target = $region40
    $region39: #{root_forward.3} parent=5 // pred_region
      %s271 = ssub.s32 %s9, 2
      // Predicated region
      $region41: #{root_forward.3} parent=39 // pred_check
        %p272 = pneg %p122
      $region42: #{root_forward.3} parent=39 // pred_check_branch
        %274 = sbr.rel (%p272) target = $region44
      $region43: #{root_forward.3} parent=39 // pred_region
        %s275 = smul.u32 2, %s21
        %p276 = scmp.lt.s32.totalorder %s20, 1
        %s277 = scalar_select %p276, %s20, 1
        %p278 = scmp.lt.s32.totalorder %s275, 1
        %s279 = scalar_select %p278, %s275, 1
        %s280 = smul.addr %s277, 4
        %s281 = sadd.s32 %s279, %s280
        %s282 = smul.addr %s281, 8
        %s283 = scalar_lea.vmem %s3, %s282
      $region44: #{root_forward.3} parent=39 // pred_fallthru
        _
    $region40: #{root_forward.3} parent=5 // pred_fallthru
      _
  $region6: #{root_forward.3} parent=0 // loop_footer
    %s13 = sadd.s32 1, %s9
  $region7: #{root_forward.3} parent=0 // loop_footer_branch
    %8 = sbr.rel target = $region3
  $region8: #{root_forward.3} parent=0 // loop_exit
    _

// kernel: root_forward.2
$region0: #{root_forward.2}
  #allocation0 [shape = 'u32[]', space=smem, size = 0x4, offset = 0x4, fixed_abs, tag = 'smem constant byte address 0x4 - core index']
  #allocation1 [shape = 'u32[144,128]{1,0:T(1,128)}', space=vmem, size = 0x12000, scoped, tag = 'internal scratch']
  %s0 = inlined_call_operand.vmem [shape: f32[2,8,256], index: 0, kind: input, shape index: {}]
  %s1 = inlined_call_operand.vmem [shape: f32[16,8], index: 1, kind: input, shape index: {}]
  %s2 = inlined_call_operand.vmem [shape: f32[2,16,256], index: 2, kind: output, shape index: {0}]
  %s3 = inlined_call_operand.vmem [shape: f32[2,16,2], index: 3, kind: output, shape index: {1}]
  %4 = xla_tuple %s2, %s3
  %s5 = sld [smem:[#allocation0]]
  $region53: #{root_forward.2} parent=0
    _
  %s7 = ssub.s32 1, %s5
  %s8 = scalar_select 0, %s7, %s5
  loop: start=0, step=1, limit=4
  $region2: #{root_forward.2} parent=0 // loop_pre_header
    _
  $region3: #{root_forward.2} parent=0 // loop_header
    %s10 = sphi 0, %s14
    %p11 = scmp.ge.s32.totalorder %s10, 4
    %s17 = sphi 0, %s29
    %s18 = sphi 0, %s25
    %s19 = sphi 0, %s17
    %s20 = sphi 0, %s18
    %s21 = sphi 0, %s19
    %s22 = sphi 0, %s20
    %s34 = sphi 0, %s36
    %s37 = sphi 0, %s34
    %s38 = sphi 0, %s37
    %s54 = sphi 0, %s38
    %s58 = sphi 0, %s58
    %s60 = sphi 0, %s58
    %s61 = sphi 0, %s60
    %s75 = sphi 0, %s61
    %s83 = sphi 0, %s85
    %s86 = sphi 0, %s83
    %s87 = sphi 0, %s86
    %s103 = sphi 0, %s87
    %s109 = sphi 0, %s111
    %s112 = sphi 0, %s109
    %s113 = sphi 0, %s112
    %s129 = sphi 0, %s113
  $region4: #{root_forward.2} parent=0 // loop_header_branch
    %13 = sbr.rel (%p11) target = $region8
  $region5: #{root_forward.2} parent=0 // loop_body
    %s15 = ssub.s32 %s10, 1
    %s16 = ssub.s32 %s10, 2
    %s23 = sadd.s32 1, %s18
    %p24 = scmp.ge.s32.totalorder %s23, 1
    %s25 = scalar_select %p24, 0, %s23
    %s26 = sadd.s32 1, %s17
    %s27 = scalar_select %p24, %s26, %s17
    %p28 = scmp.ge.s32.totalorder %s27, 2
    %s29 = scalar_select %p28, 0, %s27
    %s30 = ssub.s32 %s17, %s29
    %s31 = ssub.s32 %s18, %s25
    %s32 = sor.u32 %s30, %s31
    %p33 = scmp.eq.s32.totalorder %s32, 0
    %s35 = sadd.s32 %s34, 1
    %s36 = scalar_select %p33, %s34, %s35
    %p39 = pneg %p33
    %p40 = scmp.eq.s32.totalorder %s10, 1
    %p41 = por %p39, %p40
    %p42 = scmp.ne.s32.totalorder %s34, %s37
    %p43 = scmp.eq.s32.totalorder %s10, 0
    %p44 = por %p42, %p43
    %p45 = scmp.ne.s32.totalorder %s34, %s37
    %p46 = scmp.eq.s32.totalorder %s15, 1
    %p47 = por %p45, %p46
    %p48 = scmp.ne.s32.totalorder %s37, %s38
    %p49 = scmp.eq.s32.totalorder %s15, 0
    %p50 = por %p48, %p49
    %p51 = scmp.ne.s32.totalorder %s37, %s38
    %p52 = scmp.eq.s32.totalorder %s16, 1
    %p53 = por %p51, %p52
    %p55 = scmp.ne.s32.totalorder %s38, %s54
    %p56 = scmp.eq.s32.totalorder %s16, 0
    %p57 = por %p55, %p56
    %s59 = sadd.s32 %s58, 1
    %p62 = scmp.eq.s32.totalorder %s10, 1
    %p63 = scmp.ne.s32.totalorder %s58, %s60
    %p64 = scmp.eq.s32.totalorder %s10, 0
    %p65 = por %p63, %p64
    %p66 = scmp.ne.s32.totalorder %s58, %s60
    %p67 = scmp.eq.s32.totalorder %s15, 1
    %p68 = por %p66, %p67
    %p69 = scmp.ne.s32.totalorder %s60, %s61
    %p70 = scmp.eq.s32.totalorder %s15, 0
    %p71 = por %p69, %p70
    %p72 = scmp.ne.s32.totalorder %s60, %s61
    %p73 = scmp.eq.s32.totalorder %s16, 1
    %p74 = por %p72, %p73
    %p76 = scmp.ne.s32.totalorder %s61, %s75
    %p77 = scmp.eq.s32.totalorder %s16, 0
    %p78 = por %p76, %p77
    %s79 = ssub.s32 %s17, %s29
    %s80 = ssub.s32 %s18, %s25
    %s81 = sor.u32 %s79, %s80
    %p82 = scmp.eq.s32.totalorder %s81, 0
    %s84 = sadd.s32 %s83, 1
    %s85 = scalar_select %p82, %s83, %s84
    %p88 = pneg %p82
    %p89 = scmp.eq.s32.totalorder %s10, 1
    %p90 = por %p88, %p89
    %p91 = scmp.ne.s32.totalorder %s83, %s86
    %p92 = scmp.eq.s32.totalorder %s10, 0
    %p93 = por %p91, %p92
    %p94 = scmp.ne.s32.totalorder %s83, %s86
    %p95 = scmp.eq.s32.totalorder %s15, 1
    %p96 = por %p94, %p95
    %p97 = scmp.ne.s32.totalorder %s86, %s87
    %p98 = scmp.eq.s32.totalorder %s15, 0
    %p99 = por %p97, %p98
    %p100 = scmp.ne.s32.totalorder %s86, %s87
    %p101 = scmp.eq.s32.totalorder %s16, 1
    %p102 = por %p100, %p101
    %p104 = scmp.ne.s32.totalorder %s87, %s103
    %p105 = scmp.eq.s32.totalorder %s16, 0
    %p106 = por %p104, %p105
    %s107 = ssub.s32 %s17, %s29
    %p108 = scmp.eq.s32.totalorder %s107, 0
    %s110 = sadd.s32 %s109, 1
    %s111 = scalar_select %p108, %s109, %s110
    %p114 = pneg %p108
    %p115 = scmp.eq.s32.totalorder %s10, 1
    %p116 = por %p114, %p115
    %p117 = scmp.ne.s32.totalorder %s109, %s112
    %p118 = scmp.eq.s32.totalorder %s10, 0
    %p119 = por %p117, %p118
    %p120 = scmp.ne.s32.totalorder %s109, %s112
    %p121 = scmp.eq.s32.totalorder %s15, 1
    %p122 = por %p120, %p121
    %p123 = scmp.ne.s32.totalorder %s112, %s113
    %p124 = scmp.eq.s32.totalorder %s15, 0
    %p125 = por %p123, %p124
    %p126 = scmp.ne.s32.totalorder %s112, %s113
    %p127 = scmp.eq.s32.totalorder %s16, 1
    %p128 = por %p126, %p127
    %p130 = scmp.ne.s32.totalorder %s113, %s129
    %p131 = scmp.eq.s32.totalorder %s16, 0
    %p132 = por %p130, %p131
    %p133 = scmp.le.s32.totalorder 1, %s10
    %p134 = scmp.lt.s32.totalorder %s10, 3
    %p135 = pnand %p133, %p134
    %p136 = pneg %p135
    // Predicated region
    $region9: #{root_forward.2} parent=5 // pred_check
      _
    $region10: #{root_forward.2} parent=5 // pred_check_branch
      %138 = sbr.rel (%p135) target = $region12
    $region11: #{root_forward.2} parent=5 // pred_region
      %s139 = ssub.s32 %s10, 1
      // Predicated region
      $region13: #{root_forward.2} parent=11 // pred_check
        %p140 = pneg %p71
      $region14: #{root_forward.2} parent=11 // pred_check_branch
        %142 = sbr.rel (%p140) target = $region16
      $region15: #{root_forward.2} parent=11 // pred_region
        _
      $region16: #{root_forward.2} parent=11 // pred_fallthru
        _
    $region12: #{root_forward.2} parent=5 // pred_fallthru
      _
    %p143 = scmp.lt.s32.totalorder %s10, 2
    // Predicated region
    $region17: #{root_forward.2} parent=5 // pred_check
      %p144 = pneg %p143
    $region18: #{root_forward.2} parent=5 // pred_check_branch
      %146 = sbr.rel (%p144) target = $region20
    $region19: #{root_forward.2} parent=5 // pred_region
      // Predicated region
      $region21: #{root_forward.2} parent=19 // pred_check
        %p147 = pneg %p44
      $region22: #{root_forward.2} parent=19 // pred_check_branch
        %149 = sbr.rel (%p147) target = $region24
      $region23: #{root_forward.2} parent=19 // pred_region
        %s150 = smul.u32 2, %s18
        %p151 = scmp.lt.s32.totalorder %s17, 1
        %s152 = scalar_select %p151, %s17, 1
        %p153 = scmp.lt.s32.totalorder %s150, 1
        %s154 = scalar_select %p153, %s150, 1
        %s155 = smul.addr %s152, 2
        %s156 = sadd.s32 %s154, %s155
        %s157 = smul.addr %s156, 8
        %s158 = scalar_lea.vmem %s0, %s157
        %s159 = smul.u32 2, %s18
      $region24: #{root_forward.2} parent=19 // pred_fallthru
        _
    $region20: #{root_forward.2} parent=5 // pred_fallthru
      _
    %p160 = scmp.le.s32.totalorder 1, %s10
    %p161 = scmp.lt.s32.totalorder %s10, 3
    %p162 = pnand %p160, %p161
    %p163 = pneg %p162
    // Predicated region
    $region25: #{root_forward.2} parent=5 // pred_check
      _
    $region26: #{root_forward.2} parent=5 // pred_check_branch
      %165 = sbr.rel (%p162) target = $region28
    $region27: #{root_forward.2} parent=5 // pred_region
      %s166 = ssub.s32 %s10, 1
      %s167 = smul.u32 2, %s20
      %p168 = scmp.lt.s32.totalorder %s19, 1
      %s169 = scalar_select %p168, %s19, 1
      %p170 = scmp.lt.s32.totalorder %s167, 1
      %s171 = scalar_select %p170, %s167, 1
      %s172 = smul.addr %s169, 2
      %s173 = sadd.s32 %s171, %s172
      %s174 = smul.addr %s173, 8
      %s175 = scalar_lea.vmem %s0, %s174
      %p176 = pneg %p50
      %p177 = pneg %p47
      %p178 = pneg %p71
      %p179 = pneg %p68
      %p180 = pneg %p99
      %p181 = pneg %p96
      %s182 = smul.u32 2, %s20
      %p183 = scmp.lt.s32.totalorder %s19, 1
      %s184 = scalar_select %p183, %s19, 1
      %p185 = scmp.lt.s32.totalorder %s182, 1
      %s186 = scalar_select %p185, %s182, 1
      %s187 = smul.addr %s184, 4
      %s188 = sadd.s32 %s186, %s187
      %s189 = smul.addr %s188, 8
      %s190 = scalar_lea.vmem %s2, %s189
      %p191 = pneg %p125
      %p192 = pneg %p122
      %p193 = scmp.lt.s32.totalorder %s19, 1
      %s194 = scalar_select %p193, %s19, 1
      %s195 = smul.addr %s194, 2
      %s196 = smul.addr %s195, 8
      %s197 = scalar_lea.vmem %s3, %s196
      %s198 = smul.u32 2, %s20
      %p199 = scmp.lt.s32.totalorder %s19, 1
      %s200 = scalar_select %p199, %s19, 1
      %p201 = scmp.lt.s32.totalorder %s198, 1
      %s202 = scalar_select %p201, %s198, 1
      %s203 = smul.addr %s200, 2
      %s204 = sadd.s32 %s202, %s203
      %s205 = smul.addr %s204, 8
      %s206 = scalar_lea.vmem %s0, %s205
      %s207 = smul.u32 2, %s20
      %s208 = smul.u32 2, %s20
      %p209 = scmp.lt.s32.totalorder %s19, 1
      %s210 = scalar_select %p209, %s19, 1
      %p211 = scmp.lt.s32.totalorder %s208, 1
      %s212 = scalar_select %p211, %s208, 1
      %s213 = smul.addr %s210, 4
      %s214 = sadd.s32 %s212, %s213
      %s215 = smul.addr %s214, 8
      %s216 = scalar_lea.vmem %s2, %s215
      %s217 = smul.u32 2, %s20
      %p218 = scmp.lt.s32.totalorder %s19, 1
      %s219 = scalar_select %p218, %s19, 1
      %s220 = smul.addr %s219, 2
      %s221 = smul.addr %s220, 8
      %s222 = scalar_lea.vmem %s3, %s221
      %p223 = scmp.eq.s32.totalorder %s20, 0
      // Predicated region
      $region29: #{root_forward.2} parent=27 // pred_check
        %p224 = pneg %p223
      $region30: #{root_forward.2} parent=27 // pred_check_branch
        %226 = sbr.rel (%p224) target = $region32
      $region31: #{root_forward.2} parent=27 // pred_region
        %vm227 = vcmask 15360
        %228 = vst.msk [vmem:[%s222] sm:$0xff] %vm227, 0.0
        %229 = vst.msk [vmem:[%s222 + $0x8] sm:$0xff] %vm227, 0.0
      $region32: #{root_forward.2} parent=27 // pred_fallthru
        _
      %v230 = vld [vmem:[%s1] sm:$0xff]
      %v231 = vld [vmem:[%s1 + $0x8] sm:$0xff]
      %v232 = vld [vmem:[%s206] sm:$0xff]
      %v233 = vld [vmem:[%s206 + $0x8] sm:$0xff]
      %vm234 = vcmask 64512
      %v236 = vsel %vm234, %v230, 0
      %v239 = vsel %vm234, %v231, 0
      %241 = vmatprep.subr.mxu0 %v233
      %242 = vmatpush1.msra.mxu0 %v232
      %243 = vmatprep.subr.mxu0 0.0
      %244 = vmatpush1.msra.mxu0 0.0
      %245 = vmatprep.subr.mxu0 0.0
      %246 = vmatpush1.msra.mxu0 0.0
      %247 = vmatprep.subr.mxu0 0.0
      %248 = vmatpush1.msra.mxu0 0.0
      %249 = vmatprep.subr.mxu0 0.0
      %250 = vmatpush1.msra.mxu0 0.0
      %251 = vmatprep.subr.mxu0 0.0
      %252 = vmatpush1.msra.mxu0 0.0
      %253 = vmatprep.subr.mxu0 0.0
      %254 = vmatpush1.msra.mxu0 0.0
      %255 = vmatprep.subr.mxu0 0.0
      %256 = vmatpush1.msra.mxu0 0.0
      %257 = vmatprep.subr.mxu0 0.0
      %258 = vmatpush1.msra.mxu0 0.0
      %259 = vmatprep.subr.mxu0 0.0
      %260 = vmatpush1.msra.mxu0 0.0
      %261 = vmatprep.subr.mxu0 0.0
      %262 = vmatpush1.msra.mxu0 0.0
      %263 = vmatprep.subr.mxu0 0.0
      %264 = vmatpush1.msra.mxu0 0.0
      %265 = vmatprep.subr.mxu0 0.0
      %266 = vmatpush1.msra.mxu0 0.0
      %267 = vmatprep.subr.mxu0 0.0
      %268 = vmatpush1.msra.mxu0 0.0
      %269 = vmatprep.subr.mxu0 0.0
      %270 = vmatpush1.msra.mxu0 0.0
      %271 = vmatprep.subr.mxu0 0.0
      %272 = vmatpush1.msra.mxu0 0.0
      %273 = vmatprep.subr.mxu0 0.0
      %274 = vmatpush1.msra.mxu0 0.0
      %275 = vmatprep.subr.mxu0 0.0
      %276 = vmatpush1.msra.mxu0 0.0
      %277 = vmatprep.subr.mxu0 0.0
      %278 = vmatpush1.msra.mxu0 0.0
      %279 = vmatprep.subr.mxu0 0.0
      %280 = vmatpush1.msra.mxu0 0.0
      %281 = vmatprep.subr.mxu0 0.0
      %282 = vmatpush1.msra.mxu0 0.0
      %283 = vmatprep.subr.mxu0 0.0
      %284 = vmatpush1.msra.mxu0 0.0
      %285 = vmatprep.subr.mxu0 0.0
      %286 = vmatpush1.msra.mxu0 0.0
      %287 = vmatprep.subr.mxu0 0.0
      %288 = vmatpush1.msra.mxu0 0.0
      %289 = vmatprep.subr.mxu0 0.0
      %290 = vmatpush1.msra.mxu0 0.0
      %291 = vmatprep.subr.mxu0 0.0
      %292 = vmatpush1.msra.mxu0 0.0
      %293 = vmatprep.subr.mxu0 0.0
      %294 = vmatpush1.msra.mxu0 0.0
      %295 = vmatprep.subr.mxu0 0.0
      %296 = vmatpush1.msra.mxu0 0.0
      %297 = vmatprep.subr.mxu0 0.0
      %298 = vmatpush1.msra.mxu0 0.0
      %299 = vmatprep.subr.mxu0 0.0
      %300 = vmatpush1.msra.mxu0 0.0
      %301 = vmatprep.subr.mxu0 0.0
      %302 = vmatpush1.msra.mxu0 0.0
      %303 = vmatprep.subr.mxu0 0.0
      %304 = vmatpush1.msra.mxu0 0.0
      %305 = vmatprep.mubr.f32.mxu0 0.0
      %306 = vmatmul.mubr.f32.gmra.mrb[0].mxu0 %v236
      %v307 = vpop.f32.mrb[0].mxu0
      %v308 = vadd.f32 0.0, %v307
      %v309 = vpop.f32.mrb[0].mxu0
      %v310 = vadd.f32 0.0, %v309
      %311 = vmatprep.mubr.f32.mxu0 0.0
      %312 = vmatmul.mubr.f32.gmra.mrb[0].mxu0 %v239
      %v313 = vpop.f32.mrb[0].mxu0
      %v314 = vadd.f32 0.0, %v313
      %v315 = vpop.f32.mrb[0].mxu0
      %v316 = vadd.f32 0.0, %v315
      %317 = vdwg.mxu0
      %318 = vst [vmem:[%s216] sm:$0xff] %v308
      %319 = vst [vmem:[%s216 + $0x8] sm:$0xff] %v310
      %320 = vst [vmem:[%s216 + $0x10] sm:$0xff] %v314
      %321 = vst [vmem:[%s216 + $0x18] sm:$0xff] %v316
      %v322 = vadd.f32 %v308, %v310
      %323 = vadd.xlane.f32.xlu0 %v322
      %v324 = vpop.xlane.xlu0 %323
      %v325 = vadd.f32 %v314, %v316
      %326 = vadd.xlane.f32.xlu0 %v325
      %v327 = vpop.xlane.xlu0 %326
      %v328 = vmul.f32 %v308, %v308
      %v329 = vmul.f32 %v310, %v310
      %v330 = vmul.f32 %v314, %v314
      %v331 = vmul.f32 %v316, %v316
      %v332 = vadd.f32 %v328, %v329
      %333 = vadd.xlane.f32.xlu0 %v332
      %v334 = vpop.xlane.xlu0 %333
      %v335 = vadd.f32 %v330, %v331
      %336 = vadd.xlane.f32.xlu0 %v335
      %v337 = vpop.xlane.xlu0 %336
      %v338 = vld [vmem:[%s222] sm:$0xff]
      %v339 = vld [vmem:[%s222 + $0x8] sm:$0xff]
      %vm340 = vcmask 7168
      %v341 = vsel %vm340, %v324, %v334
      %v342 = vsel %vm340, %v327, %v337
      %v343 = vadd.f32 %v338, %v341
      %v344 = vadd.f32 %v339, %v342
      %vm345 = vcmask 15360
      %346 = vst.msk [vmem:[%s222] sm:$0xff] %vm345, %v343
      %347 = vst.msk [vmem:[%s222 + $0x8] sm:$0xff] %vm345, %v344
      %s348 = smul.u32 2, %s20
      %p349 = scmp.lt.s32.totalorder %s19, 1
      %s350 = scalar_select %p349, %s19, 1
      %p351 = scmp.lt.s32.totalorder %s348, 1
      %s352 = scalar_select %p351, %s348, 1
      %s353 = smul.addr %s350, 4
      %s354 = sadd.s32 %s352, %s353
      %s355 = smul.addr %s354, 8
      %s356 = scalar_lea.vmem %s2, %s355
      %p357 = scmp.lt.s32.totalorder %s19, 1
      %s358 = scalar_select %p357, %s19, 1
      %s359 = smul.addr %s358, 2
      %s360 = smul.addr %s359, 8
      %s361 = scalar_lea.vmem %s3, %s360
      // Predicated region
      $region33: #{root_forward.2} parent=27 // pred_check
        %p362 = pneg %p96
      $region34: #{root_forward.2} parent=27 // pred_check_branch
        %364 = sbr.rel (%p362) target = $region36
      $region35: #{root_forward.2} parent=27 // pred_region
        %s365 = smul.u32 2, %s20
      $region36: #{root_forward.2} parent=27 // pred_fallthru
        _
      // Predicated region
      $region37: #{root_forward.2} parent=27 // pred_check
        %p366 = pneg %p122
      $region38: #{root_forward.2} parent=27 // pred_check_branch
        %368 = sbr.rel (%p366) target = $region40
      $region39: #{root_forward.2} parent=27 // pred_region
        _
      $region40: #{root_forward.2} parent=27 // pred_fallthru
        _
    $region28: #{root_forward.2} parent=5 // pred_fallthru
      _
    %p369 = scmp.le.s32.totalorder 2, %s10
    // Predicated region
    $region41: #{root_forward.2} parent=5 // pred_check
      %p370 = pneg %p369
    $region42: #{root_forward.2} parent=5 // pred_check_branch
      %372 = sbr.rel (%p370) target = $region44
    $region43: #{root_forward.2} parent=5 // pred_region
      %s373 = ssub.s32 %s10, 2
      // Predicated region
      $region45: #{root_forward.2} parent=43 // pred_check
        %p374 = pneg %p102
      $region46: #{root_forward.2} parent=43 // pred_check_branch
        %376 = sbr.rel (%p374) target = $region48
      $region47: #{root_forward.2} parent=43 // pred_region
        %s377 = smul.u32 2, %s22
        %p378 = scmp.lt.s32.totalorder %s21, 1
        %s379 = scalar_select %p378, %s21, 1
        %p380 = scmp.lt.s32.totalorder %s377, 1
        %s381 = scalar_select %p380, %s377, 1
        %s382 = smul.addr %s379, 4
        %s383 = sadd.s32 %s381, %s382
        %s384 = smul.addr %s383, 8
        %s385 = scalar_lea.vmem %s2, %s384
      $region48: #{root_forward.2} parent=43 // pred_fallthru
        _
      // Predicated region
      $region49: #{root_forward.2} parent=43 // pred_check
        %p386 = pneg %p128
      $region50: #{root_forward.2} parent=43 // pred_check_branch
        %388 = sbr.rel (%p386) target = $region52
      $region51: #{root_forward.2} parent=43 // pred_region
        %p389 = scmp.lt.s32.totalorder %s21, 1
        %s390 = scalar_select %p389, %s21, 1
        %s391 = smul.addr %s390, 2
        %s392 = smul.addr %s391, 8
        %s393 = scalar_lea.vmem %s3, %s392
      $region52: #{root_forward.2} parent=43 // pred_fallthru
        _
    $region44: #{root_forward.2} parent=5 // pred_fallthru
      _
  $region6: #{root_forward.2} parent=0 // loop_footer
    %s14 = sadd.s32 1, %s10
  $region7: #{root_forward.2} parent=0 // loop_footer_branch
    %9 = sbr.rel target = $region3
  $region8: #{root_forward.2} parent=0 // loop_exit
    _

</llo_original>
